<compile_context>
chip_gen: v6e
topology: v6e:2x2x1
jax: 0.10.0
libtpu: 0.0.40
codegen_flags: <defaults>
</compile_context>

<pallas_src>
import jax
import jax.numpy as jnp
from jax.experimental import pallas as pl
from jax.experimental.pallas import tpu as pltpu

LN_EPS = 1e-5  # PyTorch nn.LayerNorm default


def _round_up(n, m):
    return (n + m - 1) // m * m


def mlp_kernel(x_ref, w1_ref, b1_ref, g_ref, beta_ref, w2_ref, b2_ref, o_ref):
    # x tile: (TILE_B, D_in); all parameter blocks are VMEM-resident across grid steps.
    x = x_ref[...]
    if x.dtype != w1_ref.dtype:          # static (trace-time) check; no-op when matched
        x = x.astype(w1_ref.dtype)

    # fc1 on the MXU, f32 accumulation.
    y = jnp.dot(x, w1_ref[...], preferred_element_type=jnp.float32) + b1_ref[...]

    # LayerNorm over the feature axis (two-pass, f32): mean -> center -> variance.
    d_inv = 1.0 / y.shape[-1]
    mean = jnp.sum(y, axis=-1, keepdims=True) * d_inv
    yc = y - mean
    var = jnp.sum(yc * yc, axis=-1, keepdims=True) * d_inv
    ln = yc * jax.lax.rsqrt(var + LN_EPS)          # rsqrt -> EUP slot
    ln = ln * g_ref[...] + beta_ref[...]

    # fc2 (+ bias) on the MXU; explicit f32 residual add (free under the MXU,
    # keeps residual at full precision even when weights are bf16).
    out = jnp.dot(ln.astype(w2_ref.dtype), w2_ref[...],
                  preferred_element_type=jnp.float32)
    out = out + b2_ref[...] + ln
    o_ref[...] = out.astype(o_ref.dtype)


def mlp_pallas(x, w1, b1, gamma, beta, w2, b2, *, tile_b=512, use_bf16_matmul=False):
    B, D_in = x.shape
    D_out = w1.shape[1]
    out_dtype = x.dtype

    b1 = b1.reshape(1, D_out)
    gamma = gamma.reshape(1, D_out)
    beta = beta.reshape(1, D_out)
    b2 = b2.reshape(1, D_out)

    # ---- one-time parameter / input prep (not per-step work) ------------------
    # bf16 only touches the MXU path; LN / residual math stays f32 in the kernel,
    # so this is a win on v5e as well as v6e/v7x.
    mm_dtype = jnp.bfloat16 if use_bf16_matmul else w1.dtype
    w1c = w1.astype(mm_dtype)
    w2c = w2.astype(mm_dtype)
    xc = x.astype(mm_dtype) if use_bf16_matmul else x   # halves x-tile DMA bytes

    # ---- batch tiling (MXU-row aligned) ---------------------------------------
    is_bf16 = jnp.dtype(mm_dtype) == jnp.dtype(jnp.bfloat16)
    row_align = 16 if is_bf16 else 8                    # bf16 packs 16 rows/sublane group
    tile_b = max(row_align, _round_up(min(tile_b, B), row_align))
    if B >= 128:
        tile_b = _round_up(tile_b, 128)                 # MXU consumes 128/256-row passes
    b_pad = _round_up(B, tile_b)
    # v7x has 2 TensorCores: prefer >=2 batch tiles so ("parallel",) can use both.
    if b_pad // tile_b < 2 and tile_b >= 256:
        tile_b //= 2
        b_pad = _round_up(B, tile_b)
    grid = (b_pad // tile_b,)
    if b_pad != B:
        xc = jnp.pad(xc, ((0, b_pad - B), (0, 0)))

    # ---- VMEM budget: physical capacity minus headroom for compiler scratch ---
    try:
        phys_vmem = int(pltpu.get_tpu_info().vmem_capacity_bytes)
    except Exception:
        phys_vmem = 128 << 20
    vmem_cap = max(32 << 20, phys_vmem - (16 << 20))    # v7x ~48 MiB, v6e/v5e ~112 MiB

    # TODO(synk): add a K-tiled (reduction grid axis + f32 accumulator) fallback for
    # weights too large to stay VMEM-resident on v7x (e.g. f32 4096x4096).

    def _run(single_buffer_params):
        const2d = lambda i: (0, 0)
        if single_buffer_params:
            # Constant index_map -> second pipeline buffer is pure VMEM waste.
            resident = lambda shape: pl.BlockSpec(shape, const2d,
                                                  pipeline_mode=pl.Buffered(1))
        else:
            resident = lambda shape: pl.BlockSpec(shape, const2d)

        in_specs = [
            pl.BlockSpec((tile_b, D_in), lambda i: (i, 0)),  # x: batch-tiled
            resident((D_in, D_out)),                         # w1: resident
            resident((1, D_out)),                            # b1
            resident((1, D_out)),                            # gamma
            resident((1, D_out)),                            # beta
            resident((D_out, D_out)),                        # w2: resident
            resident((1, D_out)),                            # b2
        ]
        out_specs = pl.BlockSpec((tile_b, D_out), lambda i: (i, 0))  # 128-lane dense

        param_bufs = 1 if single_buffer_params else 2
        est = (2 * tile_b * D_in * jnp.dtype(xc.dtype).itemsize        # x tiles (2 bufs)
               + 2 * tile_b * D_out * jnp.dtype(out_dtype).itemsize    # out tiles
               + param_bufs * ((D_in + D_out) * D_out * jnp.dtype(mm_dtype).itemsize
                               + 4 * D_out * 4)                        # weights + vectors
               + 4 * tile_b * D_out * 4)                               # intermediates
        vmem_limit = int(min(vmem_cap, max(32 << 20, 2 * est)))

        grid_spec = pltpu.PrefetchScalarGridSpec(
            num_scalar_prefetch=0,
            grid=grid,
            in_specs=in_specs,
            out_specs=out_specs,
        )
        return pl.pallas_call(
            mlp_kernel,
            out_shape=jax.ShapeDtypeStruct((b_pad, D_out), out_dtype),
            grid_spec=grid_spec,
            compiler_params=pltpu.CompilerParams(
                dimension_semantics=("parallel",),   # batch tiles are independent
                vmem_limit_bytes=vmem_limit,
            ),
        )(xc, w1c, b1, gamma, beta, w2c, b2)

    try:
        out = _run(True)
    except Exception:
        # Some JAX versions reject single-buffered BlockSpecs; fall back to default
        # double-buffering (same semantics, just more VMEM for the resident params).
        out = _run(False)
    return out[:B]


def mlp_ref(x, w1, b1, gamma, beta, w2, b2):
    y = x @ w1 + b1
    mean = jnp.mean(y, axis=-1, keepdims=True)
    var = jnp.mean((y - mean) ** 2, axis=-1, keepdims=True)
    ln = (y - mean) * jax.lax.rsqrt(var + LN_EPS) * gamma + beta
    return ln @ w2 + b2 + ln


if __name__ == "__main__":
    batch, in_features, out_features = 16, 32, 128

    key = jax.random.PRNGKey(0)
    kx, kw1, kb1, kw2, kb2 = jax.random.split(key, 5)

    x = jax.random.normal(kx, (batch, in_features), dtype=jnp.float32)

    # Deterministic parameter init (Kaiming-uniform-ish bounds, like nn.Linear defaults)
    bound1 = 1.0 / (in_features ** 0.5)
    w1 = jax.random.uniform(kw1, (in_features, out_features), jnp.float32, -bound1, bound1)
    b1 = jax.random.uniform(kb1, (1, out_features), jnp.float32, -bound1, bound1)
    bound2 = 1.0 / (out_features ** 0.5)
    w2 = jax.random.uniform(kw2, (out_features, out_features), jnp.float32, -bound2, bound2)
    b2 = jax.random.uniform(kb2, (1, out_features), jnp.float32, -bound2, bound2)
    # LayerNorm default affine params
    gamma = jnp.ones((1, out_features), jnp.float32)
    beta = jnp.zeros((1, out_features), jnp.float32)

    # Small batch tile so the demo actually exercises the grid (grid=(2,));
    # for production sizes use the default tile_b=512 and use_bf16_matmul=True.
    out = mlp_pallas(x, w1, b1, gamma, beta, w2, b2, tile_b=8, use_bf16_matmul=False)
    jax.block_until_ready(out)

    ref = mlp_ref(x, w1, b1, gamma, beta, w2, b2)
    assert out.shape == (batch, out_features)
    assert jnp.allclose(out, ref, atol=2e-4, rtol=2e-4)

    print("KERNEL_OK")
</pallas_src>

<mosaic_0001>
module attributes {stable_mosaic.version = 11 : i64} {
  func.func @mlp_kernel(%arg0: i32, %arg1: memref<8x32xf32, #tpu.memory_space<vmem>>, %arg2: memref<32x128xf32, #tpu.memory_space<vmem>>, %arg3: memref<1x128xf32, #tpu.memory_space<vmem>>, %arg4: memref<1x128xf32, #tpu.memory_space<vmem>>, %arg5: memref<1x128xf32, #tpu.memory_space<vmem>>, %arg6: memref<128x128xf32, #tpu.memory_space<vmem>>, %arg7: memref<1x128xf32, #tpu.memory_space<vmem>>, %arg8: memref<8x128xf32, #tpu.memory_space<vmem>>) attributes {dimension_semantics = [#tpu.dimension_semantics<parallel>], iteration_bounds = array<i64: 2>, scalar_prefetch = 0 : i64, scratch_operands = 0 : i64, tpu.core_type = #tpu.core_type<tc>, window_params = [{transform_indices = @transform_0, window_bounds = array<i64: 8, 32>}, {pipeline_mode = #tpu.pipeline_mode<synchronous>, transform_indices = @transform_1, window_bounds = array<i64: 32, 128>}, {pipeline_mode = #tpu.pipeline_mode<synchronous>, transform_indices = @transform_2, window_bounds = array<i64: 1, 128>}, {pipeline_mode = #tpu.pipeline_mode<synchronous>, transform_indices = @transform_3, window_bounds = array<i64: 1, 128>}, {pipeline_mode = #tpu.pipeline_mode<synchronous>, transform_indices = @transform_4, window_bounds = array<i64: 1, 128>}, {pipeline_mode = #tpu.pipeline_mode<synchronous>, transform_indices = @transform_5, window_bounds = array<i64: 128, 128>}, {pipeline_mode = #tpu.pipeline_mode<synchronous>, transform_indices = @transform_6, window_bounds = array<i64: 1, 128>}, {transform_indices = @transform_7, window_bounds = array<i64: 8, 128>}]} {
    %c0 = arith.constant 0 : index
    %c0_0 = arith.constant 0 : index
    %0 = vector.load %arg1[%c0, %c0_0] : memref<8x32xf32, #tpu.memory_space<vmem>>, vector<8x32xf32>
    %c0_1 = arith.constant 0 : index
    %c0_2 = arith.constant 0 : index
    %1 = vector.load %arg2[%c0_1, %c0_2] : memref<32x128xf32, #tpu.memory_space<vmem>>, vector<32x128xf32>
    %cst = arith.constant dense<0.000000e+00> : vector<8x128xf32>
    %2 = tpu.matmul %0, %1, %cst {dimension_numbers = #tpu.dot_dimension_numbers<[1], [0], [0], [1], [0, 0, 1, 1], [], []>} : vector<8x32xf32>, vector<32x128xf32>, vector<8x128xf32> -> vector<8x128xf32>
    %c0_3 = arith.constant 0 : index
    %c0_4 = arith.constant 0 : index
    %3 = vector.load %arg3[%c0_3, %c0_4] : memref<1x128xf32, #tpu.memory_space<vmem>>, vector<1x128xf32>
    %4 = vector.broadcast %3 : vector<1x128xf32> to vector<8x128xf32>
    %5 = arith.addf %2, %4 : vector<8x128xf32>
    %cst_5 = arith.constant dense<0.000000e+00> : vector<8xf32>
    %6 = vector.multi_reduction <add>, %5, %cst_5 [1] : vector<8x128xf32> to vector<8xf32>
    %7 = vector.shape_cast %6 : vector<8xf32> to vector<8x1xf32>
    %cst_6 = arith.constant 7.812500e-03 : f32
    %8 = vector.broadcast %cst_6 : f32 to vector<8x1xf32>
    %9 = arith.mulf %7, %8 : vector<8x1xf32>
    %10 = vector.broadcast %9 : vector<8x1xf32> to vector<8x128xf32>
    %11 = arith.subf %5, %10 : vector<8x128xf32>
    %12 = arith.mulf %11, %11 : vector<8x128xf32>
    %cst_7 = arith.constant dense<0.000000e+00> : vector<8xf32>
    %13 = vector.multi_reduction <add>, %12, %cst_7 [1] : vector<8x128xf32> to vector<8xf32>
    %14 = vector.shape_cast %13 : vector<8xf32> to vector<8x1xf32>
    %cst_8 = arith.constant 7.812500e-03 : f32
    %15 = vector.broadcast %cst_8 : f32 to vector<8x1xf32>
    %16 = arith.mulf %14, %15 : vector<8x1xf32>
    %cst_9 = arith.constant 9.99999974E-6 : f32
    %17 = vector.broadcast %cst_9 : f32 to vector<8x1xf32>
    %18 = arith.addf %16, %17 : vector<8x1xf32>
    %19 = math.rsqrt %18 : vector<8x1xf32>
    %20 = vector.broadcast %19 : vector<8x1xf32> to vector<8x128xf32>
    %21 = arith.mulf %11, %20 : vector<8x128xf32>
    %c0_10 = arith.constant 0 : index
    %c0_11 = arith.constant 0 : index
    %22 = vector.load %arg4[%c0_10, %c0_11] : memref<1x128xf32, #tpu.memory_space<vmem>>, vector<1x128xf32>
    %23 = vector.broadcast %22 : vector<1x128xf32> to vector<8x128xf32>
    %24 = arith.mulf %21, %23 : vector<8x128xf32>
    %c0_12 = arith.constant 0 : index
    %c0_13 = arith.constant 0 : index
    %25 = vector.load %arg5[%c0_12, %c0_13] : memref<1x128xf32, #tpu.memory_space<vmem>>, vector<1x128xf32>
    %26 = vector.broadcast %25 : vector<1x128xf32> to vector<8x128xf32>
    %27 = arith.addf %24, %26 : vector<8x128xf32>
    %c0_14 = arith.constant 0 : index
    %c0_15 = arith.constant 0 : index
    %28 = vector.load %arg6[%c0_14, %c0_15] : memref<128x128xf32, #tpu.memory_space<vmem>>, vector<128x128xf32>
    %cst_16 = arith.constant dense<0.000000e+00> : vector<8x128xf32>
    %29 = tpu.matmul %27, %28, %cst_16 {dimension_numbers = #tpu.dot_dimension_numbers<[1], [0], [0], [1], [0, 0, 1, 1], [], []>} : vector<8x128xf32>, vector<128x128xf32>, vector<8x128xf32> -> vector<8x128xf32>
    %c0_17 = arith.constant 0 : index
    %c0_18 = arith.constant 0 : index
    %30 = vector.load %arg7[%c0_17, %c0_18] : memref<1x128xf32, #tpu.memory_space<vmem>>, vector<1x128xf32>
    %31 = vector.broadcast %30 : vector<1x128xf32> to vector<8x128xf32>
    %32 = arith.addf %29, %31 : vector<8x128xf32>
    %33 = arith.addf %32, %27 : vector<8x128xf32>
    %c0_19 = arith.constant 0 : index
    %c0_20 = arith.constant 0 : index
    %34 = vector.load %arg8[%c0_19, %c0_20] : memref<8x128xf32, #tpu.memory_space<vmem>>, vector<8x128xf32>
    tpu.vector_store %arg8[%c0_19, %c0_20], %33 {strides = array<i32>} : memref<8x128xf32, #tpu.memory_space<vmem>>, vector<8x128xf32>,
    return
  }
  func.func @transform_0(%arg0: i32) -> (i32, i32) {
    %c0_i32 = arith.constant 0 : i32
    %c0_i32_0 = arith.constant 0 : i32
    return %arg0, %c0_i32 : i32, i32
  }
  func.func @transform_1(%arg0: i32) -> (i32, i32) {
    %c0_i32 = arith.constant 0 : i32
    %c0_i32_0 = arith.constant 0 : i32
    %c0_i32_1 = arith.constant 0 : i32
    return %c0_i32, %c0_i32_0 : i32, i32
  }
  func.func @transform_2(%arg0: i32) -> (i32, i32) {
    %c0_i32 = arith.constant 0 : i32
    %c0_i32_0 = arith.constant 0 : i32
    %c0_i32_1 = arith.constant 0 : i32
    return %c0_i32, %c0_i32_0 : i32, i32
  }
  func.func @transform_3(%arg0: i32) -> (i32, i32) {
    %c0_i32 = arith.constant 0 : i32
    %c0_i32_0 = arith.constant 0 : i32
    %c0_i32_1 = arith.constant 0 : i32
    return %c0_i32, %c0_i32_0 : i32, i32
  }
  func.func @transform_4(%arg0: i32) -> (i32, i32) {
    %c0_i32 = arith.constant 0 : i32
    %c0_i32_0 = arith.constant 0 : i32
    %c0_i32_1 = arith.constant 0 : i32
    return %c0_i32, %c0_i32_0 : i32, i32
  }
  func.func @transform_5(%arg0: i32) -> (i32, i32) {
    %c0_i32 = arith.constant 0 : i32
    %c0_i32_0 = arith.constant 0 : i32
    %c0_i32_1 = arith.constant 0 : i32
    return %c0_i32, %c0_i32_0 : i32, i32
  }
  func.func @transform_6(%arg0: i32) -> (i32, i32) {
    %c0_i32 = arith.constant 0 : i32
    %c0_i32_0 = arith.constant 0 : i32
    %c0_i32_1 = arith.constant 0 : i32
    return %c0_i32, %c0_i32_0 : i32, i32
  }
  func.func @transform_7(%arg0: i32) -> (i32, i32) {
    %c0_i32 = arith.constant 0 : i32
    %c0_i32_0 = arith.constant 0 : i32
    return %arg0, %c0_i32 : i32, i32
  }
}

module attributes {stable_mosaic.version = 11 : i64} {
  func.func @mlp_kernel(%arg0: i32, %arg1: memref<8x32xf32, #tpu.memory_space<vmem>>, %arg2: memref<32x128xf32, #tpu.memory_space<vmem>>, %arg3: memref<1x128xf32, #tpu.memory_space<vmem>>, %arg4: memref<1x128xf32, #tpu.memory_space<vmem>>, %arg5: memref<1x128xf32, #tpu.memory_space<vmem>>, %arg6: memref<128x128xf32, #tpu.memory_space<vmem>>, %arg7: memref<1x128xf32, #tpu.memory_space<vmem>>, %arg8: memref<8x128xf32, #tpu.memory_space<vmem>>) attributes {dimension_semantics = [#tpu.dimension_semantics<parallel>], iteration_bounds = array<i64: 2>, scalar_prefetch = 0 : i64, scratch_operands = 0 : i64, tpu.core_type = #tpu.core_type<tc>, window_params = [{transform_indices = @transform_0, window_bounds = array<i64: 8, 32>}, {pipeline_mode = #tpu.pipeline_mode<synchronous>, transform_indices = @transform_1, window_bounds = array<i64: 32, 128>}, {pipeline_mode = #tpu.pipeline_mode<synchronous>, transform_indices = @transform_2, window_bounds = array<i64: 1, 128>}, {pipeline_mode = #tpu.pipeline_mode<synchronous>, transform_indices = @transform_3, window_bounds = array<i64: 1, 128>}, {pipeline_mode = #tpu.pipeline_mode<synchronous>, transform_indices = @transform_4, window_bounds = array<i64: 1, 128>}, {pipeline_mode = #tpu.pipeline_mode<synchronous>, transform_indices = @transform_5, window_bounds = array<i64: 128, 128>}, {pipeline_mode = #tpu.pipeline_mode<synchronous>, transform_indices = @transform_6, window_bounds = array<i64: 1, 128>}, {transform_indices = @transform_7, window_bounds = array<i64: 8, 128>}]} {
    %c0 = arith.constant 0 : index
    %c0_0 = arith.constant 0 : index
    %0 = vector.load %arg1[%c0, %c0_0] : memref<8x32xf32, #tpu.memory_space<vmem>>, vector<8x32xf32>
    %c0_1 = arith.constant 0 : index
    %c0_2 = arith.constant 0 : index
    %1 = vector.load %arg2[%c0_1, %c0_2] : memref<32x128xf32, #tpu.memory_space<vmem>>, vector<32x128xf32>
    %cst = arith.constant dense<0.000000e+00> : vector<8x128xf32>
    %2 = tpu.matmul %0, %1, %cst {dimension_numbers = #tpu.dot_dimension_numbers<[1], [0], [0], [1], [0, 0, 1, 1], [], []>} : vector<8x32xf32>, vector<32x128xf32>, vector<8x128xf32> -> vector<8x128xf32>
    %c0_3 = arith.constant 0 : index
    %c0_4 = arith.constant 0 : index
    %3 = vector.load %arg3[%c0_3, %c0_4] : memref<1x128xf32, #tpu.memory_space<vmem>>, vector<1x128xf32>
    %4 = vector.broadcast %3 : vector<1x128xf32> to vector<8x128xf32>
    %5 = arith.addf %2, %4 : vector<8x128xf32>
    %cst_5 = arith.constant dense<0.000000e+00> : vector<8xf32>
    %6 = vector.multi_reduction <add>, %5, %cst_5 [1] : vector<8x128xf32> to vector<8xf32>
    %7 = vector.shape_cast %6 : vector<8xf32> to vector<8x1xf32>
    %cst_6 = arith.constant 7.812500e-03 : f32
    %8 = vector.broadcast %cst_6 : f32 to vector<8x1xf32>
    %9 = arith.mulf %7, %8 : vector<8x1xf32>
    %10 = vector.broadcast %9 : vector<8x1xf32> to vector<8x128xf32>
    %11 = arith.subf %5, %10 : vector<8x128xf32>
    %12 = arith.mulf %11, %11 : vector<8x128xf32>
    %cst_7 = arith.constant dense<0.000000e+00> : vector<8xf32>
    %13 = vector.multi_reduction <add>, %12, %cst_7 [1] : vector<8x128xf32> to vector<8xf32>
    %14 = vector.shape_cast %13 : vector<8xf32> to vector<8x1xf32>
    %cst_8 = arith.constant 7.812500e-03 : f32
    %15 = vector.broadcast %cst_8 : f32 to vector<8x1xf32>
    %16 = arith.mulf %14, %15 : vector<8x1xf32>
    %cst_9 = arith.constant 9.99999974E-6 : f32
    %17 = vector.broadcast %cst_9 : f32 to vector<8x1xf32>
    %18 = arith.addf %16, %17 : vector<8x1xf32>
    %19 = math.rsqrt %18 : vector<8x1xf32>
    %20 = vector.broadcast %19 : vector<8x1xf32> to vector<8x128xf32>
    %21 = arith.mulf %11, %20 : vector<8x128xf32>
    %c0_10 = arith.constant 0 : index
    %c0_11 = arith.constant 0 : index
    %22 = vector.load %arg4[%c0_10, %c0_11] : memref<1x128xf32, #tpu.memory_space<vmem>>, vector<1x128xf32>
    %23 = vector.broadcast %22 : vector<1x128xf32> to vector<8x128xf32>
    %24 = arith.mulf %21, %23 : vector<8x128xf32>
    %c0_12 = arith.constant 0 : index
    %c0_13 = arith.constant 0 : index
    %25 = vector.load %arg5[%c0_12, %c0_13] : memref<1x128xf32, #tpu.memory_space<vmem>>, vector<1x128xf32>
    %26 = vector.broadcast %25 : vector<1x128xf32> to vector<8x128xf32>
    %27 = arith.addf %24, %26 : vector<8x128xf32>
    %c0_14 = arith.constant 0 : index
    %c0_15 = arith.constant 0 : index
    %28 = vector.load %arg6[%c0_14, %c0_15] : memref<128x128xf32, #tpu.memory_space<vmem>>, vector<128x128xf32>
    %cst_16 = arith.constant dense<0.000000e+00> : vector<8x128xf32>
    %29 = tpu.matmul %27, %28, %cst_16 {dimension_numbers = #tpu.dot_dimension_numbers<[1], [0], [0], [1], [0, 0, 1, 1], [], []>} : vector<8x128xf32>, vector<128x128xf32>, vector<8x128xf32> -> vector<8x128xf32>
    %c0_17 = arith.constant 0 : index
    %c0_18 = arith.constant 0 : index
    %30 = vector.load %arg7[%c0_17, %c0_18] : memref<1x128xf32, #tpu.memory_space<vmem>>, vector<1x128xf32>
    %31 = vector.broadcast %30 : vector<1x128xf32> to vector<8x128xf32>
    %32 = arith.addf %29, %31 : vector<8x128xf32>
    %33 = arith.addf %32, %27 : vector<8x128xf32>
    %c0_19 = arith.constant 0 : index
    %c0_20 = arith.constant 0 : index
    %34 = vector.load %arg8[%c0_19, %c0_20] : memref<8x128xf32, #tpu.memory_space<vmem>>, vector<8x128xf32>
    tpu.vector_store %arg8[%c0_19, %c0_20], %33 {strides = array<i32>} : memref<8x128xf32, #tpu.memory_space<vmem>>, vector<8x128xf32>,
    return
  }
  func.func @transform_0(%arg0: i32) -> (i32, i32) {
    %c0_i32 = arith.constant 0 : i32
    %c0_i32_0 = arith.constant 0 : i32
    return %arg0, %c0_i32 : i32, i32
  }
  func.func @transform_1(%arg0: i32) -> (i32, i32) {
    %c0_i32 = arith.constant 0 : i32
    %c0_i32_0 = arith.constant 0 : i32
    %c0_i32_1 = arith.constant 0 : i32
    return %c0_i32, %c0_i32_0 : i32, i32
  }
  func.func @transform_2(%arg0: i32) -> (i32, i32) {
    %c0_i32 = arith.constant 0 : i32
    %c0_i32_0 = arith.constant 0 : i32
    %c0_i32_1 = arith.constant 0 : i32
    return %c0_i32, %c0_i32_0 : i32, i32
  }
  func.func @transform_3(%arg0: i32) -> (i32, i32) {
    %c0_i32 = arith.constant 0 : i32
    %c0_i32_0 = arith.constant 0 : i32
    %c0_i32_1 = arith.constant 0 : i32
    return %c0_i32, %c0_i32_0 : i32, i32
  }
  func.func @transform_4(%arg0: i32) -> (i32, i32) {
    %c0_i32 = arith.constant 0 : i32
    %c0_i32_0 = arith.constant 0 : i32
    %c0_i32_1 = arith.constant 0 : i32
    return %c0_i32, %c0_i32_0 : i32, i32
  }
  func.func @transform_5(%arg0: i32) -> (i32, i32) {
    %c0_i32 = arith.constant 0 : i32
    %c0_i32_0 = arith.constant 0 : i32
    %c0_i32_1 = arith.constant 0 : i32
    return %c0_i32, %c0_i32_0 : i32, i32
  }
  func.func @transform_6(%arg0: i32) -> (i32, i32) {
    %c0_i32 = arith.constant 0 : i32
    %c0_i32_0 = arith.constant 0 : i32
    %c0_i32_1 = arith.constant 0 : i32
    return %c0_i32, %c0_i32_0 : i32, i32
  }
  func.func @transform_7(%arg0: i32) -> (i32, i32) {
    %c0_i32 = arith.constant 0 : i32
    %c0_i32_0 = arith.constant 0 : i32
    return %arg0, %c0_i32 : i32, i32
  }
}

</mosaic_0001>

<llo_original>
// kernel: tpu_custom_call.1
$region0: #{tpu_custom_call.1}
  #allocation0 [shape = 'u32[]', space=smem, size = 0x4, offset = 0x4, fixed_abs, tag = 'smem constant byte address 0x4 - core index']
  #allocation1 [shape = 'u32[144,128]{1,0:T(1,128)}', space=vmem, size = 0x12000, scoped, tag = 'internal scratch']
  %s0 = inlined_call_operand.hbm [shape: f32[16,32], index: 0, kind: input, shape index: {}]
  %s1 = inlined_call_operand.hbm [shape: f32[32,128], index: 1, kind: input, shape index: {}]
  %s2 = inlined_call_operand.vmem [shape: f32[1,128], index: 2, kind: input, shape index: {}]
  %s3 = inlined_call_operand.vmem [shape: f32[1,128], index: 3, kind: input, shape index: {}]
  %s4 = inlined_call_operand.vmem [shape: f32[1,128], index: 4, kind: input, shape index: {}]
  %s5 = inlined_call_operand.hbm [shape: f32[128,128], index: 5, kind: input, shape index: {}]
  %s6 = inlined_call_operand.vmem [shape: f32[1,128], index: 6, kind: input, shape index: {}]
  %s7 = inlined_call_operand.hbm [shape: f32[16,128], index: 7, kind: output, shape index: {}]
  %s8 = sld [smem:[#allocation0]]
  $region73: #{tpu_custom_call.1} parent=0
    _
  %s10 = ssub.s32 1, %s8
  %s11 = scalar_select 0, %s10, %s8
  $region1: #{tpu_custom_call.1} parent=0
    #allocation2 [shape = 'u8[8192]{0}', space=vmem, size = 0x2000, scoped, tag = 'input window, operand 0']
    #allocation3 [shape = 's32[2]{0}', space=sflag, size = 0x8, scoped, tag = 'scoped memory for tpu_custom_call.1']
    #allocation4 [shape = 's32[2]{0}', space=sflag, size = 0x8, scoped, tag = 'scoped memory for tpu_custom_call.1']
    #allocation5 [shape = 'u8[16384]{0}', space=vmem, size = 0x4000, scoped, tag = 'input window, operand 1, single buffered']
    #allocation6 [shape = 's32[1]{0}', space=sflag, size = 0x4, scoped, tag = 'scoped memory for tpu_custom_call.1']
    #allocation7 [shape = 'u8[65536]{0}', space=vmem, size = 0x10000, scoped, tag = 'input window, operand 5, single buffered']
    #allocation8 [shape = 'u8[8192]{0}', space=vmem, size = 0x2000, scoped, tag = 'output window, operand 0']
    %12 = vsyncpa [#allocation3], 0
    %s13 = scalar_lea.sflag [#allocation3], 1
    %14 = vsyncpa %s13, 0
    %15 = vsyncpa [#allocation6], 0
    %16 = vsyncpa [#allocation4], 0
    %s17 = scalar_lea.sflag [#allocation4], 1
    %18 = vsyncpa %s17, 0
    loop: start=0, step=1, limit=4
    $region2: #{tpu_custom_call.1} parent=1 // loop_pre_header
      _
    $region3: #{tpu_custom_call.1} parent=1 // loop_header
      %s20 = sphi 0, %s24
      %p21 = scmp.ge.s32.totalorder %s20, 4
      %s30 = sphi 0, %s32
      %s33 = sphi 0, %s30
      %s34 = sphi 0, %s33
      %s50 = sphi 0, %s34
      %s54 = sphi 0, %s54
      %s56 = sphi 0, %s54
      %s57 = sphi 0, %s56
      %s71 = sphi 0, %s57
      %s75 = sphi 0, %s75
      %s77 = sphi 0, %s75
      %s78 = sphi 0, %s77
      %s92 = sphi 0, %s78
      %s96 = sphi 0, %s96
      %s98 = sphi 0, %s96
      %s99 = sphi 0, %s98
      %s113 = sphi 0, %s99
      %s117 = sphi 0, %s117
      %s119 = sphi 0, %s117
      %s120 = sphi 0, %s119
      %s134 = sphi 0, %s120
      %s138 = sphi 0, %s138
      %s140 = sphi 0, %s138
      %s141 = sphi 0, %s140
      %s155 = sphi 0, %s141
      %s159 = sphi 0, %s159
      %s161 = sphi 0, %s159
      %s162 = sphi 0, %s161
      %s176 = sphi 0, %s162
      %s182 = sphi 0, %s184
      %s185 = sphi 0, %s182
      %s186 = sphi 0, %s185
      %s202 = sphi 0, %s186
    $region4: #{tpu_custom_call.1} parent=1 // loop_header_branch
      %23 = sbr.rel (%p21) target = $region8
    $region5: #{tpu_custom_call.1} parent=1 // loop_body
      %s25 = ssub.s32 %s20, 1
      %s26 = ssub.s32 %s20, 2
      %s27 = sadd.s32 %s20, 1
      %s28 = ssub.s32 %s20, %s27
      %p29 = scmp.eq.s32.totalorder %s28, 0
      %s31 = sadd.s32 %s30, 1
      %s32 = scalar_select %p29, %s30, %s31
      %p35 = pneg %p29
      %p36 = scmp.eq.s32.totalorder %s20, 1
      %p37 = por %p35, %p36
      %p38 = scmp.ne.s32.totalorder %s30, %s33
      %p39 = scmp.eq.s32.totalorder %s20, 0
      %p40 = por %p38, %p39
      %p41 = scmp.ne.s32.totalorder %s30, %s33
      %p42 = scmp.eq.s32.totalorder %s25, 1
      %p43 = por %p41, %p42
      %p44 = scmp.ne.s32.totalorder %s33, %s34
      %p45 = scmp.eq.s32.totalorder %s25, 0
      %p46 = por %p44, %p45
      %p47 = scmp.ne.s32.totalorder %s33, %s34
      %p48 = scmp.eq.s32.totalorder %s26, 1
      %p49 = por %p47, %p48
      %p51 = scmp.ne.s32.totalorder %s34, %s50
      %p52 = scmp.eq.s32.totalorder %s26, 0
      %p53 = por %p51, %p52
      %s55 = sadd.s32 %s54, 1
      %p58 = scmp.eq.s32.totalorder %s20, 1
      %p59 = scmp.ne.s32.totalorder %s54, %s56
      %p60 = scmp.eq.s32.totalorder %s20, 0
      %p61 = por %p59, %p60
      %p62 = scmp.ne.s32.totalorder %s54, %s56
      %p63 = scmp.eq.s32.totalorder %s25, 1
      %p64 = por %p62, %p63
      %p65 = scmp.ne.s32.totalorder %s56, %s57
      %p66 = scmp.eq.s32.totalorder %s25, 0
      %p67 = por %p65, %p66
      %p68 = scmp.ne.s32.totalorder %s56, %s57
      %p69 = scmp.eq.s32.totalorder %s26, 1
      %p70 = por %p68, %p69
      %p72 = scmp.ne.s32.totalorder %s57, %s71
      %p73 = scmp.eq.s32.totalorder %s26, 0
      %p74 = por %p72, %p73
      %s76 = sadd.s32 %s75, 1
      %p79 = scmp.eq.s32.totalorder %s20, 1
      %p80 = scmp.ne.s32.totalorder %s75, %s77
      %p81 = scmp.eq.s32.totalorder %s20, 0
      %p82 = por %p80, %p81
      %p83 = scmp.ne.s32.totalorder %s75, %s77
      %p84 = scmp.eq.s32.totalorder %s25, 1
      %p85 = por %p83, %p84
      %p86 = scmp.ne.s32.totalorder %s77, %s78
      %p87 = scmp.eq.s32.totalorder %s25, 0
      %p88 = por %p86, %p87
      %p89 = scmp.ne.s32.totalorder %s77, %s78
      %p90 = scmp.eq.s32.totalorder %s26, 1
      %p91 = por %p89, %p90
      %p93 = scmp.ne.s32.totalorder %s78, %s92
      %p94 = scmp.eq.s32.totalorder %s26, 0
      %p95 = por %p93, %p94
      %s97 = sadd.s32 %s96, 1
      %p100 = scmp.eq.s32.totalorder %s20, 1
      %p101 = scmp.ne.s32.totalorder %s96, %s98
      %p102 = scmp.eq.s32.totalorder %s20, 0
      %p103 = por %p101, %p102
      %p104 = scmp.ne.s32.totalorder %s96, %s98
      %p105 = scmp.eq.s32.totalorder %s25, 1
      %p106 = por %p104, %p105
      %p107 = scmp.ne.s32.totalorder %s98, %s99
      %p108 = scmp.eq.s32.totalorder %s25, 0
      %p109 = por %p107, %p108
      %p110 = scmp.ne.s32.totalorder %s98, %s99
      %p111 = scmp.eq.s32.totalorder %s26, 1
      %p112 = por %p110, %p111
      %p114 = scmp.ne.s32.totalorder %s99, %s113
      %p115 = scmp.eq.s32.totalorder %s26, 0
      %p116 = por %p114, %p115
      %s118 = sadd.s32 %s117, 1
      %p121 = scmp.eq.s32.totalorder %s20, 1
      %p122 = scmp.ne.s32.totalorder %s117, %s119
      %p123 = scmp.eq.s32.totalorder %s20, 0
      %p124 = por %p122, %p123
      %p125 = scmp.ne.s32.totalorder %s117, %s119
      %p126 = scmp.eq.s32.totalorder %s25, 1
      %p127 = por %p125, %p126
      %p128 = scmp.ne.s32.totalorder %s119, %s120
      %p129 = scmp.eq.s32.totalorder %s25, 0
      %p130 = por %p128, %p129
      %p131 = scmp.ne.s32.totalorder %s119, %s120
      %p132 = scmp.eq.s32.totalorder %s26, 1
      %p133 = por %p131, %p132
      %p135 = scmp.ne.s32.totalorder %s120, %s134
      %p136 = scmp.eq.s32.totalorder %s26, 0
      %p137 = por %p135, %p136
      %s139 = sadd.s32 %s138, 1
      %p142 = scmp.eq.s32.totalorder %s20, 1
      %p143 = scmp.ne.s32.totalorder %s138, %s140
      %p144 = scmp.eq.s32.totalorder %s20, 0
      %p145 = por %p143, %p144
      %p146 = scmp.ne.s32.totalorder %s138, %s140
      %p147 = scmp.eq.s32.totalorder %s25, 1
      %p148 = por %p146, %p147
      %p149 = scmp.ne.s32.totalorder %s140, %s141
      %p150 = scmp.eq.s32.totalorder %s25, 0
      %p151 = por %p149, %p150
      %p152 = scmp.ne.s32.totalorder %s140, %s141
      %p153 = scmp.eq.s32.totalorder %s26, 1
      %p154 = por %p152, %p153
      %p156 = scmp.ne.s32.totalorder %s141, %s155
      %p157 = scmp.eq.s32.totalorder %s26, 0
      %p158 = por %p156, %p157
      %s160 = sadd.s32 %s159, 1
      %p163 = scmp.eq.s32.totalorder %s20, 1
      %p164 = scmp.ne.s32.totalorder %s159, %s161
      %p165 = scmp.eq.s32.totalorder %s20, 0
      %p166 = por %p164, %p165
      %p167 = scmp.ne.s32.totalorder %s159, %s161
      %p168 = scmp.eq.s32.totalorder %s25, 1
      %p169 = por %p167, %p168
      %p170 = scmp.ne.s32.totalorder %s161, %s162
      %p171 = scmp.eq.s32.totalorder %s25, 0
      %p172 = por %p170, %p171
      %p173 = scmp.ne.s32.totalorder %s161, %s162
      %p174 = scmp.eq.s32.totalorder %s26, 1
      %p175 = por %p173, %p174
      %p177 = scmp.ne.s32.totalorder %s162, %s176
      %p178 = scmp.eq.s32.totalorder %s26, 0
      %p179 = por %p177, %p178
      %s180 = ssub.s32 %s20, %s27
      %p181 = scmp.eq.s32.totalorder %s180, 0
      %s183 = sadd.s32 %s182, 1
      %s184 = scalar_select %p181, %s182, %s183
      %p187 = pneg %p181
      %p188 = scmp.eq.s32.totalorder %s20, 1
      %p189 = por %p187, %p188
      %p190 = scmp.ne.s32.totalorder %s182, %s185
      %p191 = scmp.eq.s32.totalorder %s20, 0
      %p192 = por %p190, %p191
      %p193 = scmp.ne.s32.totalorder %s182, %s185
      %p194 = scmp.eq.s32.totalorder %s25, 1
      %p195 = por %p193, %p194
      %p196 = scmp.ne.s32.totalorder %s185, %s186
      %p197 = scmp.eq.s32.totalorder %s25, 0
      %p198 = por %p196, %p197
      %p199 = scmp.ne.s32.totalorder %s185, %s186
      %p200 = scmp.eq.s32.totalorder %s26, 1
      %p201 = por %p199, %p200
      %p203 = scmp.ne.s32.totalorder %s186, %s202
      %p204 = scmp.eq.s32.totalorder %s26, 0
      %p205 = por %p203, %p204
      %p206 = scmp.le.s32.totalorder 1, %s20
      %p207 = scmp.lt.s32.totalorder %s20, 3
      %p208 = pnand %p206, %p207
      %p209 = pneg %p208
      // Predicated region
      $region9: #{tpu_custom_call.1} parent=5 // pred_check
        _
      $region10: #{tpu_custom_call.1} parent=5 // pred_check_branch
        %211 = sbr.rel (%p208) target = $region12
      $region11: #{tpu_custom_call.1} parent=5 // pred_region
        %s212 = ssub.s32 %s20, 1
        // Predicated region
        $region13: #{tpu_custom_call.1} parent=11 // pred_check
          %p213 = pneg %p67
        $region14: #{tpu_custom_call.1} parent=11 // pred_check_branch
          %215 = sbr.rel (%p213) target = $region16
        $region15: #{tpu_custom_call.1} parent=11 // pred_region
          %s217 = ssub.s32 512, 512
          %218 = vsyncadd [#allocation6], %s217
          %s219 = sshll.u32 [#allocation5], 4
          %s220 = int_to_ptr.vmem [resolvable:$true] %s219
          %225 = dma.hbm_to_vmem [thread:$0]  %s1, 512, %s220, [#allocation6], 128, 128, 8
        $region16: #{tpu_custom_call.1} parent=11 // pred_fallthru
          _
        // Predicated region
        $region17: #{tpu_custom_call.1} parent=11 // pred_check
          %p226 = pneg %p88
        $region18: #{tpu_custom_call.1} parent=11 // pred_check_branch
          %228 = sbr.rel (%p226) target = $region20
        $region19: #{tpu_custom_call.1} parent=11 // pred_region
          _
        $region20: #{tpu_custom_call.1} parent=11 // pred_fallthru
          _
        // Predicated region
        $region21: #{tpu_custom_call.1} parent=11 // pred_check
          %p229 = pneg %p109
        $region22: #{tpu_custom_call.1} parent=11 // pred_check_branch
          %231 = sbr.rel (%p229) target = $region24
        $region23: #{tpu_custom_call.1} parent=11 // pred_region
          _
        $region24: #{tpu_custom_call.1} parent=11 // pred_fallthru
          _
        // Predicated region
        $region25: #{tpu_custom_call.1} parent=11 // pred_check
          %p232 = pneg %p130
        $region26: #{tpu_custom_call.1} parent=11 // pred_check_branch
          %234 = sbr.rel (%p232) target = $region28
        $region27: #{tpu_custom_call.1} parent=11 // pred_region
          _
        $region28: #{tpu_custom_call.1} parent=11 // pred_fallthru
          _
        // Predicated region
        $region29: #{tpu_custom_call.1} parent=11 // pred_check
          %p235 = pneg %p151
        $region30: #{tpu_custom_call.1} parent=11 // pred_check_branch
          %237 = sbr.rel (%p235) target = $region32
        $region31: #{tpu_custom_call.1} parent=11 // pred_region
          %s239 = ssub.s32 2048, 2048
          %240 = vsyncadd [#allocation6], %s239
          %s241 = sshll.u32 [#allocation7], 4
          %s242 = int_to_ptr.vmem [resolvable:$true] %s241
          %247 = dma.hbm_to_vmem [thread:$0]  %s5, 2048, %s242, [#allocation6], 128, 128, 8
        $region32: #{tpu_custom_call.1} parent=11 // pred_fallthru
          _
        // Predicated region
        $region33: #{tpu_custom_call.1} parent=11 // pred_check
          %p248 = pneg %p172
        $region34: #{tpu_custom_call.1} parent=11 // pred_check_branch
          %250 = sbr.rel (%p248) target = $region36
        $region35: #{tpu_custom_call.1} parent=11 // pred_region
          _
        $region36: #{tpu_custom_call.1} parent=11 // pred_fallthru
          _
      $region12: #{tpu_custom_call.1} parent=5 // pred_fallthru
        _
      %p251 = scmp.lt.s32.totalorder %s20, 2
      // Predicated region
      $region37: #{tpu_custom_call.1} parent=5 // pred_check
        %p252 = pneg %p251
      $region38: #{tpu_custom_call.1} parent=5 // pred_check_branch
        %254 = sbr.rel (%p252) target = $region40
      $region39: #{tpu_custom_call.1} parent=5 // pred_region
        // Predicated region
        $region41: #{tpu_custom_call.1} parent=39 // pred_check
          %p255 = pneg %p40
        $region42: #{tpu_custom_call.1} parent=39 // pred_check_branch
          %257 = sbr.rel (%p255) target = $region44
        $region43: #{tpu_custom_call.1} parent=39 // pred_region
          %s258 = sand.u32 %s30, 1
          %s259 = scalar_lea.sflag [#allocation3], %s258
          %s260 = sand.u32 %s30, 1
          %s261 = smul.addr %s260, 8
          %s262 = scalar_lea.vmem [#allocation2], %s261
          %s264 = ssub.s32 128, 128
          %265 = vsyncadd %s259, %s264
          %s266 = smul.addr %s20, 128
          %s267 = scalar_lea.hbm %s0, %s266
          %s269 = sshll.u32 %s262, 4
          %s270 = int_to_ptr.vmem [resolvable:$true] %s269
          %272 = dma.hbm_to_vmem [thread:$0]  %s267, 128, %s270, %s259
        $region44: #{tpu_custom_call.1} parent=39 // pred_fallthru
          _
      $region40: #{tpu_custom_call.1} parent=5 // pred_fallthru
        _
      %p273 = scmp.le.s32.totalorder 1, %s20
      %p274 = scmp.lt.s32.totalorder %s20, 3
      %p275 = pnand %p273, %p274
      %p276 = pneg %p275
      // Predicated region
      $region45: #{tpu_custom_call.1} parent=5 // pred_check
        _
      $region46: #{tpu_custom_call.1} parent=5 // pred_check_branch
        %278 = sbr.rel (%p275) target = $region48
      $region47: #{tpu_custom_call.1} parent=5 // pred_region
        %s279 = ssub.s32 %s20, 1
        %s280 = sand.u32 %s33, 1
        %s281 = scalar_lea.sflag [#allocation3], %s280
        %s282 = sand.u32 %s33, 1
        %s283 = smul.addr %s282, 8
        %s284 = scalar_lea.vmem [#allocation2], %s283
        // Predicated region
        $region49: #{tpu_custom_call.1} parent=47 // pred_check
          %p285 = pneg %p46
        $region50: #{tpu_custom_call.1} parent=47 // pred_check_branch
          %287 = sbr.rel (%p285) target = $region52
        $region51: #{tpu_custom_call.1} parent=47 // pred_region
          %288 = dma.done %s281, 128
        $region52: #{tpu_custom_call.1} parent=47 // pred_fallthru
          _
        // Predicated region
        $region53: #{tpu_custom_call.1} parent=47 // pred_check
          %p289 = pneg %p67
        $region54: #{tpu_custom_call.1} parent=47 // pred_check_branch
          %291 = sbr.rel (%p289) target = $region56
        $region55: #{tpu_custom_call.1} parent=47 // pred_region
          %292 = dma.done [#allocation6], 512
        $region56: #{tpu_custom_call.1} parent=47 // pred_fallthru
          _
        // Predicated region
        $region57: #{tpu_custom_call.1} parent=47 // pred_check
          %p293 = pneg %p151
        $region58: #{tpu_custom_call.1} parent=47 // pred_check_branch
          %295 = sbr.rel (%p293) target = $region60
        $region59: #{tpu_custom_call.1} parent=47 // pred_region
          %296 = dma.done [#allocation6], 2048
        $region60: #{tpu_custom_call.1} parent=47 // pred_fallthru
          _
        %s297 = sand.u32 %s33, 1
        %s298 = scalar_lea.sflag [#allocation3], %s297
        %s299 = sand.u32 %s33, 1
        %s300 = smul.addr %s299, 8
        %s301 = scalar_lea.vmem [#allocation2], %s300
        %p302 = pneg %p46
        %p303 = pneg %p43
        %p304 = pneg %p67
        %p305 = pneg %p64
        %p306 = pneg %p88
        %p307 = pneg %p85
        %p308 = pneg %p109
        %p309 = pneg %p106
        %p310 = pneg %p130
        %p311 = pneg %p127
        %p312 = pneg %p151
        %p313 = pneg %p148
        %p314 = pneg %p172
        %p315 = pneg %p169
        %p316 = pneg %p198
        %p317 = pneg %p195
        %s318 = sand.u32 %s185, 1
        %s319 = scalar_lea.sflag [#allocation4], %s318
        %s320 = sand.u32 %s185, 1
        %s321 = smul.addr %s320, 8
        %s322 = scalar_lea.vmem [#allocation8], %s321
        %v323 = vld [vmem:[%s284] sm:$0xff]
        %v324 = vld [vmem:[#allocation5] sm:$0xff]
        %v325 = vld [vmem:[#allocation5 + $0x8] sm:$0xff]
        %v326 = vld [vmem:[#allocation5 + $0x10] sm:$0xff]
        %v327 = vld [vmem:[#allocation5 + $0x18] sm:$0xff]
        %v328 = vld [vmem:[%s2] sm:$0x1]
        %v330 = vlaneseq
        %v331 = vshrl.u32 %v330, 7
        %v332 = vsub.s32 0, %v331
        %v333 = vrot.slane %v328, %v332
        %vm335 = vcmask 261120
        %v337 = vsel %vm335, %v323, 0
        %339 = vmatprep.subr.mxu0 0.0
        %340 = vmatpush1.msra.mxu0 0.0
        %341 = vmatprep.subr.mxu0 0.0
        %342 = vmatpush1.msra.mxu0 0.0
        %343 = vmatprep.subr.mxu0 0.0
        %344 = vmatpush1.msra.mxu0 0.0
        %345 = vmatprep.subr.mxu0 0.0
        %346 = vmatpush1.msra.mxu0 0.0
        %347 = vmatprep.subr.mxu0 0.0
        %348 = vmatpush1.msra.mxu0 0.0
        %349 = vmatprep.subr.mxu0 0.0
        %350 = vmatpush1.msra.mxu0 0.0
        %351 = vmatprep.subr.mxu0 0.0
        %352 = vmatpush1.msra.mxu0 0.0
        %353 = vmatprep.subr.mxu0 0.0
        %354 = vmatpush1.msra.mxu0 0.0
        %355 = vmatprep.subr.mxu0 0.0
        %356 = vmatpush1.msra.mxu0 0.0
        %357 = vmatprep.subr.mxu0 0.0
        %358 = vmatpush1.msra.mxu0 0.0
        %359 = vmatprep.subr.mxu0 0.0
        %360 = vmatpush1.msra.mxu0 0.0
        %361 = vmatprep.subr.mxu0 0.0
        %362 = vmatpush1.msra.mxu0 0.0
        %363 = vmatprep.subr.mxu0 0.0
        %364 = vmatpush1.msra.mxu0 %v327
        %365 = vmatprep.subr.mxu0 0.0
        %366 = vmatpush1.msra.mxu0 %v326
        %367 = vmatprep.subr.mxu0 0.0
        %368 = vmatpush1.msra.mxu0 %v325
        %369 = vmatprep.subr.mxu0 0.0
        %370 = vmatpush1.msra.mxu0 %v324
        %371 = vmatprep.subr.mxu0 0.0
        %372 = vmatpush2.msra.mxu0 0.0
        %373 = vmatprep.subr.mxu0 0.0
        %374 = vmatpush2.msra.mxu0 0.0
        %375 = vmatprep.subr.mxu0 0.0
        %376 = vmatpush2.msra.mxu0 0.0
        %377 = vmatprep.subr.mxu0 0.0
        %378 = vmatpush2.msra.mxu0 0.0
        %379 = vmatprep.subr.mxu0 0.0
        %380 = vmatpush2.msra.mxu0 0.0
        %381 = vmatprep.subr.mxu0 0.0
        %382 = vmatpush2.msra.mxu0 0.0
        %383 = vmatprep.subr.mxu0 0.0
        %384 = vmatpush2.msra.mxu0 0.0
        %385 = vmatprep.subr.mxu0 0.0
        %386 = vmatpush2.msra.mxu0 0.0
        %387 = vmatprep.subr.mxu0 0.0
        %388 = vmatpush2.msra.mxu0 0.0
        %389 = vmatprep.subr.mxu0 0.0
        %390 = vmatpush2.msra.mxu0 0.0
        %391 = vmatprep.subr.mxu0 0.0
        %392 = vmatpush2.msra.mxu0 0.0
        %393 = vmatprep.subr.mxu0 0.0
        %394 = vmatpush2.msra.mxu0 0.0
        %395 = vmatprep.subr.mxu0 0.0
        %396 = vmatpush2.msra.mxu0 0.0
        %397 = vmatprep.subr.mxu0 0.0
        %398 = vmatpush2.msra.mxu0 0.0
        %399 = vmatprep.subr.mxu0 0.0
        %400 = vmatpush2.msra.mxu0 0.0
        %401 = vmatprep.subr.mxu0 0.0
        %402 = vmatpush2.msra.mxu0 0.0
        %403 = vmatprep.mubr.f32.mxu0 0.0
        %404 = vmatmul.mubr.f32.gmra.mxu0 %v337
        %v405 = vpop.f32.mrf.mxu0
        %v406 = vadd.f32 %v333, %v405
        %v407 = vpop.f32.mrf.mxu0
        %408 = vdwg.mxu0
        %409 = vadd.xlane.f32.xlu0 %v406
        %v410 = vpop.xlane.xlu0 %409
        %v411 = vmul.f32 %v410, 0.0078125
        %v412 = vsub.f32 %v406, %v411
        %v413 = vmul.f32 %v412, %v412
        %414 = vadd.xlane.f32.xlu0 %v413
        %v415 = vpop.xlane.xlu0 %414
        %v416 = vmul.f32 %v415, 0.0078125
        %v417 = vadd.f32 %v416, 1e-05
        %v418 = vrsqrt.pop %v417
        %v419 = vmul.f32 %v412, %v418
        %v420 = vld [vmem:[%s3] sm:$0x1]
        %v422 = vlaneseq
        %v423 = vshrl.u32 %v422, 7
        %v424 = vsub.s32 0, %v423
        %v425 = vrot.slane %v420, %v424
        %v427 = vmul.f32 %v419, %v425
        %v428 = vld [vmem:[%s4] sm:$0x1]
        %v430 = vlaneseq
        %v431 = vshrl.u32 %v430, 7
        %v432 = vsub.s32 0, %v431
        %v433 = vrot.slane %v428, %v432
        %v435 = vadd.f32 %v427, %v433
        %v436 = vld [vmem:[#allocation7] sm:$0xff]
        %v437 = vld [vmem:[#allocation7 + $0x8] sm:$0xff]
        %v438 = vld [vmem:[#allocation7 + $0x10] sm:$0xff]
        %v439 = vld [vmem:[#allocation7 + $0x18] sm:$0xff]
        %v440 = vld [vmem:[#allocation7 + $0x20] sm:$0xff]
        %v441 = vld [vmem:[#allocation7 + $0x28] sm:$0xff]
        %v442 = vld [vmem:[#allocation7 + $0x30] sm:$0xff]
        %v443 = vld [vmem:[#allocation7 + $0x38] sm:$0xff]
        %v444 = vld [vmem:[#allocation7 + $0x40] sm:$0xff]
        %v445 = vld [vmem:[#allocation7 + $0x48] sm:$0xff]
        %v446 = vld [vmem:[#allocation7 + $0x50] sm:$0xff]
        %v447 = vld [vmem:[#allocation7 + $0x58] sm:$0xff]
        %v448 = vld [vmem:[#allocation7 + $0x60] sm:$0xff]
        %v449 = vld [vmem:[#allocation7 + $0x68] sm:$0xff]
        %v450 = vld [vmem:[#allocation7 + $0x70] sm:$0xff]
        %v451 = vld [vmem:[#allocation7 + $0x78] sm:$0xff]
        %v452 = vld [vmem:[%s6] sm:$0x1]
        %v454 = vlaneseq
        %v455 = vshrl.u32 %v454, 7
        %v456 = vsub.s32 0, %v455
        %v457 = vrot.slane %v452, %v456
        %459 = vmatprep.subr.mxu0 0.0
        %460 = vmatpush1.msra.mxu0 %v451
        %461 = vmatprep.subr.mxu0 0.0
        %462 = vmatpush1.msra.mxu0 %v450
        %463 = vmatprep.subr.mxu0 0.0
        %464 = vmatpush1.msra.mxu0 %v449
        %465 = vmatprep.subr.mxu0 0.0
        %466 = vmatpush1.msra.mxu0 %v448
        %467 = vmatprep.subr.mxu0 0.0
        %468 = vmatpush1.msra.mxu0 %v447
        %469 = vmatprep.subr.mxu0 0.0
        %470 = vmatpush1.msra.mxu0 %v446
        %471 = vmatprep.subr.mxu0 0.0
        %472 = vmatpush1.msra.mxu0 %v445
        %473 = vmatprep.subr.mxu0 0.0
        %474 = vmatpush1.msra.mxu0 %v444
        %475 = vmatprep.subr.mxu0 0.0
        %476 = vmatpush1.msra.mxu0 %v443
        %477 = vmatprep.subr.mxu0 0.0
        %478 = vmatpush1.msra.mxu0 %v442
        %479 = vmatprep.subr.mxu0 0.0
        %480 = vmatpush1.msra.mxu0 %v441
        %481 = vmatprep.subr.mxu0 0.0
        %482 = vmatpush1.msra.mxu0 %v440
        %483 = vmatprep.subr.mxu0 0.0
        %484 = vmatpush1.msra.mxu0 %v439
        %485 = vmatprep.subr.mxu0 0.0
        %486 = vmatpush1.msra.mxu0 %v438
        %487 = vmatprep.subr.mxu0 0.0
        %488 = vmatpush1.msra.mxu0 %v437
        %489 = vmatprep.subr.mxu0 0.0
        %490 = vmatpush1.msra.mxu0 %v436
        %491 = vmatprep.subr.mxu0 0.0
        %492 = vmatpush2.msra.mxu0 0.0
        %493 = vmatprep.subr.mxu0 0.0
        %494 = vmatpush2.msra.mxu0 0.0
        %495 = vmatprep.subr.mxu0 0.0
        %496 = vmatpush2.msra.mxu0 0.0
        %497 = vmatprep.subr.mxu0 0.0
        %498 = vmatpush2.msra.mxu0 0.0
        %499 = vmatprep.subr.mxu0 0.0
        %500 = vmatpush2.msra.mxu0 0.0
        %501 = vmatprep.subr.mxu0 0.0
        %502 = vmatpush2.msra.mxu0 0.0
        %503 = vmatprep.subr.mxu0 0.0
        %504 = vmatpush2.msra.mxu0 0.0
        %505 = vmatprep.subr.mxu0 0.0
        %506 = vmatpush2.msra.mxu0 0.0
        %507 = vmatprep.subr.mxu0 0.0
        %508 = vmatpush2.msra.mxu0 0.0
        %509 = vmatprep.subr.mxu0 0.0
        %510 = vmatpush2.msra.mxu0 0.0
        %511 = vmatprep.subr.mxu0 0.0
        %512 = vmatpush2.msra.mxu0 0.0
        %513 = vmatprep.subr.mxu0 0.0
        %514 = vmatpush2.msra.mxu0 0.0
        %515 = vmatprep.subr.mxu0 0.0
        %516 = vmatpush2.msra.mxu0 0.0
        %517 = vmatprep.subr.mxu0 0.0
        %518 = vmatpush2.msra.mxu0 0.0
        %519 = vmatprep.subr.mxu0 0.0
        %520 = vmatpush2.msra.mxu0 0.0
        %521 = vmatprep.subr.mxu0 0.0
        %522 = vmatpush2.msra.mxu0 0.0
        %523 = vmatprep.mubr.f32.mxu0 0.0
        %524 = vmatmul.mubr.f32.gmra.mxu0 %v435
        %v525 = vpop.f32.mrf.mxu0
        %v526 = vadd.f32 %v457, %v525
        %v527 = vpop.f32.mrf.mxu0
        %528 = vdwg.mxu0
        %v529 = vadd.f32 %v526, %v435
        %530 = vst [vmem:[%s322] sm:$0xff] %v529
        %s531 = sand.u32 %s185, 1
        %s532 = scalar_lea.sflag [#allocation4], %s531
        %s533 = sand.u32 %s185, 1
        %s534 = smul.addr %s533, 8
        %s535 = scalar_lea.vmem [#allocation8], %s534
        // Predicated region
        $region61: #{tpu_custom_call.1} parent=47 // pred_check
          %p536 = pneg %p195
        $region62: #{tpu_custom_call.1} parent=47 // pred_check_branch
          %538 = sbr.rel (%p536) target = $region64
        $region63: #{tpu_custom_call.1} parent=47 // pred_region
          %s540 = ssub.s32 128, 128
          %541 = vsyncadd %s532, %s540
          %s542 = smul.addr %s25, 128
          %s543 = scalar_lea.hbm %s7, %s542
          %s545 = sshll.u32 %s535, 4
          %s546 = int_to_ptr.vmem [resolvable:$true] %s545
          %548 = dma.vmem_to_hbm [thread:$0]  %s546, 128, %s543, %s532
        $region64: #{tpu_custom_call.1} parent=47 // pred_fallthru
          _
      $region48: #{tpu_custom_call.1} parent=5 // pred_fallthru
        _
      %p549 = scmp.le.s32.totalorder 2, %s20
      // Predicated region
      $region65: #{tpu_custom_call.1} parent=5 // pred_check
        %p550 = pneg %p549
      $region66: #{tpu_custom_call.1} parent=5 // pred_check_branch
        %552 = sbr.rel (%p550) target = $region68
      $region67: #{tpu_custom_call.1} parent=5 // pred_region
        %s553 = ssub.s32 %s20, 2
        // Predicated region
        $region69: #{tpu_custom_call.1} parent=67 // pred_check
          %p554 = pneg %p201
        $region70: #{tpu_custom_call.1} parent=67 // pred_check_branch
          %556 = sbr.rel (%p554) target = $region72
        $region71: #{tpu_custom_call.1} parent=67 // pred_region
          %s557 = sand.u32 %s186, 1
          %s558 = scalar_lea.sflag [#allocation4], %s557
          %s559 = sand.u32 %s186, 1
          %s560 = smul.addr %s559, 8
          %s561 = scalar_lea.vmem [#allocation8], %s560
          %562 = dma.done %s558, 128
        $region72: #{tpu_custom_call.1} parent=67 // pred_fallthru
          _
      $region68: #{tpu_custom_call.1} parent=5 // pred_fallthru
        _
    $region6: #{tpu_custom_call.1} parent=1 // loop_footer
      %s24 = sadd.s32 1, %s20
    $region7: #{tpu_custom_call.1} parent=1 // loop_footer_branch
      %19 = sbr.rel target = $region3
    $region8: #{tpu_custom_call.1} parent=1 // loop_exit
      _
    %563 = vsyncpa [#allocation3], 1
    %s564 = scalar_lea.sflag [#allocation3], 1
    %565 = vsyncpa %s564, 1
    %566 = vsyncpa [#allocation6], 1
    %567 = vsyncpa [#allocation4], 1
    %s568 = scalar_lea.sflag [#allocation4], 1
    %569 = vsyncpa %s568, 1

// kernel: tpu_custom_call.1
$region0: #{tpu_custom_call.1}
  #allocation0 [shape = 'u32[]', space=smem, size = 0x4, offset = 0x4, fixed_abs, tag = 'smem constant byte address 0x4 - core index']
  #allocation1 [shape = 'u32[144,128]{1,0:T(1,128)}', space=vmem, size = 0x12000, scoped, tag = 'internal scratch']
  %s0 = inlined_call_operand.hbm [shape: f32[16,32], index: 0, kind: input, shape index: {}]
  %s1 = inlined_call_operand.hbm [shape: f32[32,128], index: 1, kind: input, shape index: {}]
  %s2 = inlined_call_operand.vmem [shape: f32[1,128], index: 2, kind: input, shape index: {}]
  %s3 = inlined_call_operand.vmem [shape: f32[1,128], index: 3, kind: input, shape index: {}]
  %s4 = inlined_call_operand.vmem [shape: f32[1,128], index: 4, kind: input, shape index: {}]
  %s5 = inlined_call_operand.hbm [shape: f32[128,128], index: 5, kind: input, shape index: {}]
  %s6 = inlined_call_operand.vmem [shape: f32[1,128], index: 6, kind: input, shape index: {}]
  %s7 = inlined_call_operand.hbm [shape: f32[16,128], index: 7, kind: output, shape index: {}]
  %s8 = sld [smem:[#allocation0]]
  $region73: #{tpu_custom_call.1} parent=0
    _
  %s10 = ssub.s32 1, %s8
  %s11 = scalar_select 0, %s10, %s8
  $region1: #{tpu_custom_call.1} parent=0
    #allocation2 [shape = 'u8[8192]{0}', space=vmem, size = 0x2000, scoped, tag = 'input window, operand 0']
    #allocation3 [shape = 's32[2]{0}', space=sflag, size = 0x8, scoped, tag = 'scoped memory for tpu_custom_call.1']
    #allocation4 [shape = 's32[2]{0}', space=sflag, size = 0x8, scoped, tag = 'scoped memory for tpu_custom_call.1']
    #allocation5 [shape = 'u8[16384]{0}', space=vmem, size = 0x4000, scoped, tag = 'input window, operand 1, single buffered']
    #allocation6 [shape = 's32[1]{0}', space=sflag, size = 0x4, scoped, tag = 'scoped memory for tpu_custom_call.1']
    #allocation7 [shape = 'u8[65536]{0}', space=vmem, size = 0x10000, scoped, tag = 'input window, operand 5, single buffered']
    #allocation8 [shape = 'u8[8192]{0}', space=vmem, size = 0x2000, scoped, tag = 'output window, operand 0']
    %12 = vsyncpa [#allocation3], 0
    %s13 = scalar_lea.sflag [#allocation3], 1
    %14 = vsyncpa %s13, 0
    %15 = vsyncpa [#allocation6], 0
    %16 = vsyncpa [#allocation4], 0
    %s17 = scalar_lea.sflag [#allocation4], 1
    %18 = vsyncpa %s17, 0
    loop: start=0, step=1, limit=4
    $region2: #{tpu_custom_call.1} parent=1 // loop_pre_header
      _
    $region3: #{tpu_custom_call.1} parent=1 // loop_header
      %s20 = sphi 0, %s24
      %p21 = scmp.ge.s32.totalorder %s20, 4
      %s30 = sphi 0, %s32
      %s33 = sphi 0, %s30
      %s34 = sphi 0, %s33
      %s50 = sphi 0, %s34
      %s54 = sphi 0, %s54
      %s56 = sphi 0, %s54
      %s57 = sphi 0, %s56
      %s71 = sphi 0, %s57
      %s75 = sphi 0, %s75
      %s77 = sphi 0, %s75
      %s78 = sphi 0, %s77
      %s92 = sphi 0, %s78
      %s96 = sphi 0, %s96
      %s98 = sphi 0, %s96
      %s99 = sphi 0, %s98
      %s113 = sphi 0, %s99
      %s117 = sphi 0, %s117
      %s119 = sphi 0, %s117
      %s120 = sphi 0, %s119
      %s134 = sphi 0, %s120
      %s138 = sphi 0, %s138
      %s140 = sphi 0, %s138
      %s141 = sphi 0, %s140
      %s155 = sphi 0, %s141
      %s159 = sphi 0, %s159
      %s161 = sphi 0, %s159
      %s162 = sphi 0, %s161
      %s176 = sphi 0, %s162
      %s182 = sphi 0, %s184
      %s185 = sphi 0, %s182
      %s186 = sphi 0, %s185
      %s202 = sphi 0, %s186
    $region4: #{tpu_custom_call.1} parent=1 // loop_header_branch
      %23 = sbr.rel (%p21) target = $region8
    $region5: #{tpu_custom_call.1} parent=1 // loop_body
      %s25 = ssub.s32 %s20, 1
      %s26 = ssub.s32 %s20, 2
      %s27 = sadd.s32 %s20, 1
      %s28 = ssub.s32 %s20, %s27
      %p29 = scmp.eq.s32.totalorder %s28, 0
      %s31 = sadd.s32 %s30, 1
      %s32 = scalar_select %p29, %s30, %s31
      %p35 = pneg %p29
      %p36 = scmp.eq.s32.totalorder %s20, 1
      %p37 = por %p35, %p36
      %p38 = scmp.ne.s32.totalorder %s30, %s33
      %p39 = scmp.eq.s32.totalorder %s20, 0
      %p40 = por %p38, %p39
      %p41 = scmp.ne.s32.totalorder %s30, %s33
      %p42 = scmp.eq.s32.totalorder %s25, 1
      %p43 = por %p41, %p42
      %p44 = scmp.ne.s32.totalorder %s33, %s34
      %p45 = scmp.eq.s32.totalorder %s25, 0
      %p46 = por %p44, %p45
      %p47 = scmp.ne.s32.totalorder %s33, %s34
      %p48 = scmp.eq.s32.totalorder %s26, 1
      %p49 = por %p47, %p48
      %p51 = scmp.ne.s32.totalorder %s34, %s50
      %p52 = scmp.eq.s32.totalorder %s26, 0
      %p53 = por %p51, %p52
      %s55 = sadd.s32 %s54, 1
      %p58 = scmp.eq.s32.totalorder %s20, 1
      %p59 = scmp.ne.s32.totalorder %s54, %s56
      %p60 = scmp.eq.s32.totalorder %s20, 0
      %p61 = por %p59, %p60
      %p62 = scmp.ne.s32.totalorder %s54, %s56
      %p63 = scmp.eq.s32.totalorder %s25, 1
      %p64 = por %p62, %p63
      %p65 = scmp.ne.s32.totalorder %s56, %s57
      %p66 = scmp.eq.s32.totalorder %s25, 0
      %p67 = por %p65, %p66
      %p68 = scmp.ne.s32.totalorder %s56, %s57
      %p69 = scmp.eq.s32.totalorder %s26, 1
      %p70 = por %p68, %p69
      %p72 = scmp.ne.s32.totalorder %s57, %s71
      %p73 = scmp.eq.s32.totalorder %s26, 0
      %p74 = por %p72, %p73
      %s76 = sadd.s32 %s75, 1
      %p79 = scmp.eq.s32.totalorder %s20, 1
      %p80 = scmp.ne.s32.totalorder %s75, %s77
      %p81 = scmp.eq.s32.totalorder %s20, 0
      %p82 = por %p80, %p81
      %p83 = scmp.ne.s32.totalorder %s75, %s77
      %p84 = scmp.eq.s32.totalorder %s25, 1
      %p85 = por %p83, %p84
      %p86 = scmp.ne.s32.totalorder %s77, %s78
      %p87 = scmp.eq.s32.totalorder %s25, 0
      %p88 = por %p86, %p87
      %p89 = scmp.ne.s32.totalorder %s77, %s78
      %p90 = scmp.eq.s32.totalorder %s26, 1
      %p91 = por %p89, %p90
      %p93 = scmp.ne.s32.totalorder %s78, %s92
      %p94 = scmp.eq.s32.totalorder %s26, 0
      %p95 = por %p93, %p94
      %s97 = sadd.s32 %s96, 1
      %p100 = scmp.eq.s32.totalorder %s20, 1
      %p101 = scmp.ne.s32.totalorder %s96, %s98
      %p102 = scmp.eq.s32.totalorder %s20, 0
      %p103 = por %p101, %p102
      %p104 = scmp.ne.s32.totalorder %s96, %s98
      %p105 = scmp.eq.s32.totalorder %s25, 1
      %p106 = por %p104, %p105
      %p107 = scmp.ne.s32.totalorder %s98, %s99
      %p108 = scmp.eq.s32.totalorder %s25, 0
      %p109 = por %p107, %p108
      %p110 = scmp.ne.s32.totalorder %s98, %s99
      %p111 = scmp.eq.s32.totalorder %s26, 1
      %p112 = por %p110, %p111
      %p114 = scmp.ne.s32.totalorder %s99, %s113
      %p115 = scmp.eq.s32.totalorder %s26, 0
      %p116 = por %p114, %p115
      %s118 = sadd.s32 %s117, 1
      %p121 = scmp.eq.s32.totalorder %s20, 1
      %p122 = scmp.ne.s32.totalorder %s117, %s119
      %p123 = scmp.eq.s32.totalorder %s20, 0
      %p124 = por %p122, %p123
      %p125 = scmp.ne.s32.totalorder %s117, %s119
      %p126 = scmp.eq.s32.totalorder %s25, 1
      %p127 = por %p125, %p126
      %p128 = scmp.ne.s32.totalorder %s119, %s120
      %p129 = scmp.eq.s32.totalorder %s25, 0
      %p130 = por %p128, %p129
      %p131 = scmp.ne.s32.totalorder %s119, %s120
      %p132 = scmp.eq.s32.totalorder %s26, 1
      %p133 = por %p131, %p132
      %p135 = scmp.ne.s32.totalorder %s120, %s134
      %p136 = scmp.eq.s32.totalorder %s26, 0
      %p137 = por %p135, %p136
      %s139 = sadd.s32 %s138, 1
      %p142 = scmp.eq.s32.totalorder %s20, 1
      %p143 = scmp.ne.s32.totalorder %s138, %s140
      %p144 = scmp.eq.s32.totalorder %s20, 0
      %p145 = por %p143, %p144
      %p146 = scmp.ne.s32.totalorder %s138, %s140
      %p147 = scmp.eq.s32.totalorder %s25, 1
      %p148 = por %p146, %p147
      %p149 = scmp.ne.s32.totalorder %s140, %s141
      %p150 = scmp.eq.s32.totalorder %s25, 0
      %p151 = por %p149, %p150
      %p152 = scmp.ne.s32.totalorder %s140, %s141
      %p153 = scmp.eq.s32.totalorder %s26, 1
      %p154 = por %p152, %p153
      %p156 = scmp.ne.s32.totalorder %s141, %s155
      %p157 = scmp.eq.s32.totalorder %s26, 0
      %p158 = por %p156, %p157
      %s160 = sadd.s32 %s159, 1
      %p163 = scmp.eq.s32.totalorder %s20, 1
      %p164 = scmp.ne.s32.totalorder %s159, %s161
      %p165 = scmp.eq.s32.totalorder %s20, 0
      %p166 = por %p164, %p165
      %p167 = scmp.ne.s32.totalorder %s159, %s161
      %p168 = scmp.eq.s32.totalorder %s25, 1
      %p169 = por %p167, %p168
      %p170 = scmp.ne.s32.totalorder %s161, %s162
      %p171 = scmp.eq.s32.totalorder %s25, 0
      %p172 = por %p170, %p171
      %p173 = scmp.ne.s32.totalorder %s161, %s162
      %p174 = scmp.eq.s32.totalorder %s26, 1
      %p175 = por %p173, %p174
      %p177 = scmp.ne.s32.totalorder %s162, %s176
      %p178 = scmp.eq.s32.totalorder %s26, 0
      %p179 = por %p177, %p178
      %s180 = ssub.s32 %s20, %s27
      %p181 = scmp.eq.s32.totalorder %s180, 0
      %s183 = sadd.s32 %s182, 1
      %s184 = scalar_select %p181, %s182, %s183
      %p187 = pneg %p181
      %p188 = scmp.eq.s32.totalorder %s20, 1
      %p189 = por %p187, %p188
      %p190 = scmp.ne.s32.totalorder %s182, %s185
      %p191 = scmp.eq.s32.totalorder %s20, 0
      %p192 = por %p190, %p191
      %p193 = scmp.ne.s32.totalorder %s182, %s185
      %p194 = scmp.eq.s32.totalorder %s25, 1
      %p195 = por %p193, %p194
      %p196 = scmp.ne.s32.totalorder %s185, %s186
      %p197 = scmp.eq.s32.totalorder %s25, 0
      %p198 = por %p196, %p197
      %p199 = scmp.ne.s32.totalorder %s185, %s186
      %p200 = scmp.eq.s32.totalorder %s26, 1
      %p201 = por %p199, %p200
      %p203 = scmp.ne.s32.totalorder %s186, %s202
      %p204 = scmp.eq.s32.totalorder %s26, 0
      %p205 = por %p203, %p204
      %p206 = scmp.le.s32.totalorder 1, %s20
      %p207 = scmp.lt.s32.totalorder %s20, 3
      %p208 = pnand %p206, %p207
      %p209 = pneg %p208
      // Predicated region
      $region9: #{tpu_custom_call.1} parent=5 // pred_check
        _
      $region10: #{tpu_custom_call.1} parent=5 // pred_check_branch
        %211 = sbr.rel (%p208) target = $region12
      $region11: #{tpu_custom_call.1} parent=5 // pred_region
        %s212 = ssub.s32 %s20, 1
        // Predicated region
        $region13: #{tpu_custom_call.1} parent=11 // pred_check
          %p213 = pneg %p67
        $region14: #{tpu_custom_call.1} parent=11 // pred_check_branch
          %215 = sbr.rel (%p213) target = $region16
        $region15: #{tpu_custom_call.1} parent=11 // pred_region
          %s217 = ssub.s32 512, 512
          %218 = vsyncadd [#allocation6], %s217
          %s219 = sshll.u32 [#allocation5], 4
          %s220 = int_to_ptr.vmem [resolvable:$true] %s219
          %225 = dma.hbm_to_vmem [thread:$0]  %s1, 512, %s220, [#allocation6], 128, 128, 8
        $region16: #{tpu_custom_call.1} parent=11 // pred_fallthru
          _
        // Predicated region
        $region17: #{tpu_custom_call.1} parent=11 // pred_check
          %p226 = pneg %p88
        $region18: #{tpu_custom_call.1} parent=11 // pred_check_branch
          %228 = sbr.rel (%p226) target = $region20
        $region19: #{tpu_custom_call.1} parent=11 // pred_region
          _
        $region20: #{tpu_custom_call.1} parent=11 // pred_fallthru
          _
        // Predicated region
        $region21: #{tpu_custom_call.1} parent=11 // pred_check
          %p229 = pneg %p109
        $region22: #{tpu_custom_call.1} parent=11 // pred_check_branch
          %231 = sbr.rel (%p229) target = $region24
        $region23: #{tpu_custom_call.1} parent=11 // pred_region
          _
        $region24: #{tpu_custom_call.1} parent=11 // pred_fallthru
          _
        // Predicated region
        $region25: #{tpu_custom_call.1} parent=11 // pred_check
          %p232 = pneg %p130
        $region26: #{tpu_custom_call.1} parent=11 // pred_check_branch
          %234 = sbr.rel (%p232) target = $region28
        $region27: #{tpu_custom_call.1} parent=11 // pred_region
          _
        $region28: #{tpu_custom_call.1} parent=11 // pred_fallthru
          _
        // Predicated region
        $region29: #{tpu_custom_call.1} parent=11 // pred_check
          %p235 = pneg %p151
        $region30: #{tpu_custom_call.1} parent=11 // pred_check_branch
          %237 = sbr.rel (%p235) target = $region32
        $region31: #{tpu_custom_call.1} parent=11 // pred_region
          %s239 = ssub.s32 2048, 2048
          %240 = vsyncadd [#allocation6], %s239
          %s241 = sshll.u32 [#allocation7], 4
          %s242 = int_to_ptr.vmem [resolvable:$true] %s241
          %247 = dma.hbm_to_vmem [thread:$0]  %s5, 2048, %s242, [#allocation6], 128, 128, 8
        $region32: #{tpu_custom_call.1} parent=11 // pred_fallthru
          _
        // Predicated region
        $region33: #{tpu_custom_call.1} parent=11 // pred_check
          %p248 = pneg %p172
        $region34: #{tpu_custom_call.1} parent=11 // pred_check_branch
          %250 = sbr.rel (%p248) target = $region36
        $region35: #{tpu_custom_call.1} parent=11 // pred_region
          _
        $region36: #{tpu_custom_call.1} parent=11 // pred_fallthru
          _
      $region12: #{tpu_custom_call.1} parent=5 // pred_fallthru
        _
      %p251 = scmp.lt.s32.totalorder %s20, 2
      // Predicated region
      $region37: #{tpu_custom_call.1} parent=5 // pred_check
        %p252 = pneg %p251
      $region38: #{tpu_custom_call.1} parent=5 // pred_check_branch
        %254 = sbr.rel (%p252) target = $region40
      $region39: #{tpu_custom_call.1} parent=5 // pred_region
        // Predicated region
        $region41: #{tpu_custom_call.1} parent=39 // pred_check
          %p255 = pneg %p40
        $region42: #{tpu_custom_call.1} parent=39 // pred_check_branch
          %257 = sbr.rel (%p255) target = $region44
        $region43: #{tpu_custom_call.1} parent=39 // pred_region
          %s258 = sand.u32 %s30, 1
          %s259 = scalar_lea.sflag [#allocation3], %s258
          %s260 = sand.u32 %s30, 1
          %s261 = smul.addr %s260, 8
          %s262 = scalar_lea.vmem [#allocation2], %s261
          %s264 = ssub.s32 128, 128
          %265 = vsyncadd %s259, %s264
          %s266 = smul.addr %s20, 128
          %s267 = scalar_lea.hbm %s0, %s266
          %s269 = sshll.u32 %s262, 4
          %s270 = int_to_ptr.vmem [resolvable:$true] %s269
          %272 = dma.hbm_to_vmem [thread:$0]  %s267, 128, %s270, %s259
        $region44: #{tpu_custom_call.1} parent=39 // pred_fallthru
          _
      $region40: #{tpu_custom_call.1} parent=5 // pred_fallthru
        _
      %p273 = scmp.le.s32.totalorder 1, %s20
      %p274 = scmp.lt.s32.totalorder %s20, 3
      %p275 = pnand %p273, %p274
      %p276 = pneg %p275
      // Predicated region
      $region45: #{tpu_custom_call.1} parent=5 // pred_check
        _
      $region46: #{tpu_custom_call.1} parent=5 // pred_check_branch
        %278 = sbr.rel (%p275) target = $region48
      $region47: #{tpu_custom_call.1} parent=5 // pred_region
        %s279 = ssub.s32 %s20, 1
        %s280 = sand.u32 %s33, 1
        %s281 = scalar_lea.sflag [#allocation3], %s280
        %s282 = sand.u32 %s33, 1
        %s283 = smul.addr %s282, 8
        %s284 = scalar_lea.vmem [#allocation2], %s283
        // Predicated region
        $region49: #{tpu_custom_call.1} parent=47 // pred_check
          %p285 = pneg %p46
        $region50: #{tpu_custom_call.1} parent=47 // pred_check_branch
          %287 = sbr.rel (%p285) target = $region52
        $region51: #{tpu_custom_call.1} parent=47 // pred_region
          %288 = dma.done %s281, 128
        $region52: #{tpu_custom_call.1} parent=47 // pred_fallthru
          _
        // Predicated region
        $region53: #{tpu_custom_call.1} parent=47 // pred_check
          %p289 = pneg %p67
        $region54: #{tpu_custom_call.1} parent=47 // pred_check_branch
          %291 = sbr.rel (%p289) target = $region56
        $region55: #{tpu_custom_call.1} parent=47 // pred_region
          %292 = dma.done [#allocation6], 512
        $region56: #{tpu_custom_call.1} parent=47 // pred_fallthru
          _
        // Predicated region
        $region57: #{tpu_custom_call.1} parent=47 // pred_check
          %p293 = pneg %p151
        $region58: #{tpu_custom_call.1} parent=47 // pred_check_branch
          %295 = sbr.rel (%p293) target = $region60
        $region59: #{tpu_custom_call.1} parent=47 // pred_region
          %296 = dma.done [#allocation6], 2048
        $region60: #{tpu_custom_call.1} parent=47 // pred_fallthru
          _
        %s297 = sand.u32 %s33, 1
        %s298 = scalar_lea.sflag [#allocation3], %s297
        %s299 = sand.u32 %s33, 1
        %s300 = smul.addr %s299, 8
        %s301 = scalar_lea.vmem [#allocation2], %s300
        %p302 = pneg %p46
        %p303 = pneg %p43
        %p304 = pneg %p67
        %p305 = pneg %p64
        %p306 = pneg %p88
        %p307 = pneg %p85
        %p308 = pneg %p109
        %p309 = pneg %p106
        %p310 = pneg %p130
        %p311 = pneg %p127
        %p312 = pneg %p151
        %p313 = pneg %p148
        %p314 = pneg %p172
        %p315 = pneg %p169
        %p316 = pneg %p198
        %p317 = pneg %p195
        %s318 = sand.u32 %s185, 1
        %s319 = scalar_lea.sflag [#allocation4], %s318
        %s320 = sand.u32 %s185, 1
        %s321 = smul.addr %s320, 8
        %s322 = scalar_lea.vmem [#allocation8], %s321
        %v323 = vld [vmem:[%s284] sm:$0xff]
        %v324 = vld [vmem:[#allocation5] sm:$0xff]
        %v325 = vld [vmem:[#allocation5 + $0x8] sm:$0xff]
        %v326 = vld [vmem:[#allocation5 + $0x10] sm:$0xff]
        %v327 = vld [vmem:[#allocation5 + $0x18] sm:$0xff]
        %v328 = vld [vmem:[%s2] sm:$0x1]
        %v330 = vlaneseq
        %v331 = vshrl.u32 %v330, 7
        %v332 = vsub.s32 0, %v331
        %v333 = vrot.slane %v328, %v332
        %vm335 = vcmask 261120
        %v337 = vsel %vm335, %v323, 0
        %339 = vmatprep.subr.mxu0 0.0
        %340 = vmatpush1.msra.mxu0 0.0
        %341 = vmatprep.subr.mxu0 0.0
        %342 = vmatpush1.msra.mxu0 0.0
        %343 = vmatprep.subr.mxu0 0.0
        %344 = vmatpush1.msra.mxu0 0.0
        %345 = vmatprep.subr.mxu0 0.0
        %346 = vmatpush1.msra.mxu0 0.0
        %347 = vmatprep.subr.mxu0 0.0
        %348 = vmatpush1.msra.mxu0 0.0
        %349 = vmatprep.subr.mxu0 0.0
        %350 = vmatpush1.msra.mxu0 0.0
        %351 = vmatprep.subr.mxu0 0.0
        %352 = vmatpush1.msra.mxu0 0.0
        %353 = vmatprep.subr.mxu0 0.0
        %354 = vmatpush1.msra.mxu0 0.0
        %355 = vmatprep.subr.mxu0 0.0
        %356 = vmatpush1.msra.mxu0 0.0
        %357 = vmatprep.subr.mxu0 0.0
        %358 = vmatpush1.msra.mxu0 0.0
        %359 = vmatprep.subr.mxu0 0.0
        %360 = vmatpush1.msra.mxu0 0.0
        %361 = vmatprep.subr.mxu0 0.0
        %362 = vmatpush1.msra.mxu0 0.0
        %363 = vmatprep.subr.mxu0 0.0
        %364 = vmatpush1.msra.mxu0 %v327
        %365 = vmatprep.subr.mxu0 0.0
        %366 = vmatpush1.msra.mxu0 %v326
        %367 = vmatprep.subr.mxu0 0.0
        %368 = vmatpush1.msra.mxu0 %v325
        %369 = vmatprep.subr.mxu0 0.0
        %370 = vmatpush1.msra.mxu0 %v324
        %371 = vmatprep.subr.mxu0 0.0
        %372 = vmatpush2.msra.mxu0 0.0
        %373 = vmatprep.subr.mxu0 0.0
        %374 = vmatpush2.msra.mxu0 0.0
        %375 = vmatprep.subr.mxu0 0.0
        %376 = vmatpush2.msra.mxu0 0.0
        %377 = vmatprep.subr.mxu0 0.0
        %378 = vmatpush2.msra.mxu0 0.0
        %379 = vmatprep.subr.mxu0 0.0
        %380 = vmatpush2.msra.mxu0 0.0
        %381 = vmatprep.subr.mxu0 0.0
        %382 = vmatpush2.msra.mxu0 0.0
        %383 = vmatprep.subr.mxu0 0.0
        %384 = vmatpush2.msra.mxu0 0.0
        %385 = vmatprep.subr.mxu0 0.0
        %386 = vmatpush2.msra.mxu0 0.0
        %387 = vmatprep.subr.mxu0 0.0
        %388 = vmatpush2.msra.mxu0 0.0
        %389 = vmatprep.subr.mxu0 0.0
        %390 = vmatpush2.msra.mxu0 0.0
        %391 = vmatprep.subr.mxu0 0.0
        %392 = vmatpush2.msra.mxu0 0.0
        %393 = vmatprep.subr.mxu0 0.0
        %394 = vmatpush2.msra.mxu0 0.0
        %395 = vmatprep.subr.mxu0 0.0
        %396 = vmatpush2.msra.mxu0 0.0
        %397 = vmatprep.subr.mxu0 0.0
        %398 = vmatpush2.msra.mxu0 0.0
        %399 = vmatprep.subr.mxu0 0.0
        %400 = vmatpush2.msra.mxu0 0.0
        %401 = vmatprep.subr.mxu0 0.0
        %402 = vmatpush2.msra.mxu0 0.0
        %403 = vmatprep.mubr.f32.mxu0 0.0
        %404 = vmatmul.mubr.f32.gmra.mxu0 %v337
        %v405 = vpop.f32.mrf.mxu0
        %v406 = vadd.f32 %v333, %v405
        %v407 = vpop.f32.mrf.mxu0
        %408 = vdwg.mxu0
        %409 = vadd.xlane.f32.xlu0 %v406
        %v410 = vpop.xlane.xlu0 %409
        %v411 = vmul.f32 %v410, 0.0078125
        %v412 = vsub.f32 %v406, %v411
        %v413 = vmul.f32 %v412, %v412
        %414 = vadd.xlane.f32.xlu0 %v413
        %v415 = vpop.xlane.xlu0 %414
        %v416 = vmul.f32 %v415, 0.0078125
        %v417 = vadd.f32 %v416, 1e-05
        %v418 = vrsqrt.pop %v417
        %v419 = vmul.f32 %v412, %v418
        %v420 = vld [vmem:[%s3] sm:$0x1]
        %v422 = vlaneseq
        %v423 = vshrl.u32 %v422, 7
        %v424 = vsub.s32 0, %v423
        %v425 = vrot.slane %v420, %v424
        %v427 = vmul.f32 %v419, %v425
        %v428 = vld [vmem:[%s4] sm:$0x1]
        %v430 = vlaneseq
        %v431 = vshrl.u32 %v430, 7
        %v432 = vsub.s32 0, %v431
        %v433 = vrot.slane %v428, %v432
        %v435 = vadd.f32 %v427, %v433
        %v436 = vld [vmem:[#allocation7] sm:$0xff]
        %v437 = vld [vmem:[#allocation7 + $0x8] sm:$0xff]
        %v438 = vld [vmem:[#allocation7 + $0x10] sm:$0xff]
        %v439 = vld [vmem:[#allocation7 + $0x18] sm:$0xff]
        %v440 = vld [vmem:[#allocation7 + $0x20] sm:$0xff]
        %v441 = vld [vmem:[#allocation7 + $0x28] sm:$0xff]
        %v442 = vld [vmem:[#allocation7 + $0x30] sm:$0xff]
        %v443 = vld [vmem:[#allocation7 + $0x38] sm:$0xff]
        %v444 = vld [vmem:[#allocation7 + $0x40] sm:$0xff]
        %v445 = vld [vmem:[#allocation7 + $0x48] sm:$0xff]
        %v446 = vld [vmem:[#allocation7 + $0x50] sm:$0xff]
        %v447 = vld [vmem:[#allocation7 + $0x58] sm:$0xff]
        %v448 = vld [vmem:[#allocation7 + $0x60] sm:$0xff]
        %v449 = vld [vmem:[#allocation7 + $0x68] sm:$0xff]
        %v450 = vld [vmem:[#allocation7 + $0x70] sm:$0xff]
        %v451 = vld [vmem:[#allocation7 + $0x78] sm:$0xff]
        %v452 = vld [vmem:[%s6] sm:$0x1]
        %v454 = vlaneseq
        %v455 = vshrl.u32 %v454, 7
        %v456 = vsub.s32 0, %v455
        %v457 = vrot.slane %v452, %v456
        %459 = vmatprep.subr.mxu0 0.0
        %460 = vmatpush1.msra.mxu0 %v451
        %461 = vmatprep.subr.mxu0 0.0
        %462 = vmatpush1.msra.mxu0 %v450
        %463 = vmatprep.subr.mxu0 0.0
        %464 = vmatpush1.msra.mxu0 %v449
        %465 = vmatprep.subr.mxu0 0.0
        %466 = vmatpush1.msra.mxu0 %v448
        %467 = vmatprep.subr.mxu0 0.0
        %468 = vmatpush1.msra.mxu0 %v447
        %469 = vmatprep.subr.mxu0 0.0
        %470 = vmatpush1.msra.mxu0 %v446
        %471 = vmatprep.subr.mxu0 0.0
        %472 = vmatpush1.msra.mxu0 %v445
        %473 = vmatprep.subr.mxu0 0.0
        %474 = vmatpush1.msra.mxu0 %v444
        %475 = vmatprep.subr.mxu0 0.0
        %476 = vmatpush1.msra.mxu0 %v443
        %477 = vmatprep.subr.mxu0 0.0
        %478 = vmatpush1.msra.mxu0 %v442
        %479 = vmatprep.subr.mxu0 0.0
        %480 = vmatpush1.msra.mxu0 %v441
        %481 = vmatprep.subr.mxu0 0.0
        %482 = vmatpush1.msra.mxu0 %v440
        %483 = vmatprep.subr.mxu0 0.0
        %484 = vmatpush1.msra.mxu0 %v439
        %485 = vmatprep.subr.mxu0 0.0
        %486 = vmatpush1.msra.mxu0 %v438
        %487 = vmatprep.subr.mxu0 0.0
        %488 = vmatpush1.msra.mxu0 %v437
        %489 = vmatprep.subr.mxu0 0.0
        %490 = vmatpush1.msra.mxu0 %v436
        %491 = vmatprep.subr.mxu0 0.0
        %492 = vmatpush2.msra.mxu0 0.0
        %493 = vmatprep.subr.mxu0 0.0
        %494 = vmatpush2.msra.mxu0 0.0
        %495 = vmatprep.subr.mxu0 0.0
        %496 = vmatpush2.msra.mxu0 0.0
        %497 = vmatprep.subr.mxu0 0.0
        %498 = vmatpush2.msra.mxu0 0.0
        %499 = vmatprep.subr.mxu0 0.0
        %500 = vmatpush2.msra.mxu0 0.0
        %501 = vmatprep.subr.mxu0 0.0
        %502 = vmatpush2.msra.mxu0 0.0
        %503 = vmatprep.subr.mxu0 0.0
        %504 = vmatpush2.msra.mxu0 0.0
        %505 = vmatprep.subr.mxu0 0.0
        %506 = vmatpush2.msra.mxu0 0.0
        %507 = vmatprep.subr.mxu0 0.0
        %508 = vmatpush2.msra.mxu0 0.0
        %509 = vmatprep.subr.mxu0 0.0
        %510 = vmatpush2.msra.mxu0 0.0
        %511 = vmatprep.subr.mxu0 0.0
        %512 = vmatpush2.msra.mxu0 0.0
        %513 = vmatprep.subr.mxu0 0.0
        %514 = vmatpush2.msra.mxu0 0.0
        %515 = vmatprep.subr.mxu0 0.0
        %516 = vmatpush2.msra.mxu0 0.0
        %517 = vmatprep.subr.mxu0 0.0
        %518 = vmatpush2.msra.mxu0 0.0
        %519 = vmatprep.subr.mxu0 0.0
        %520 = vmatpush2.msra.mxu0 0.0
        %521 = vmatprep.subr.mxu0 0.0
        %522 = vmatpush2.msra.mxu0 0.0
        %523 = vmatprep.mubr.f32.mxu0 0.0
        %524 = vmatmul.mubr.f32.gmra.mxu0 %v435
        %v525 = vpop.f32.mrf.mxu0
        %v526 = vadd.f32 %v457, %v525
        %v527 = vpop.f32.mrf.mxu0
        %528 = vdwg.mxu0
        %v529 = vadd.f32 %v526, %v435
        %530 = vst [vmem:[%s322] sm:$0xff] %v529
        %s531 = sand.u32 %s185, 1
        %s532 = scalar_lea.sflag [#allocation4], %s531
        %s533 = sand.u32 %s185, 1
        %s534 = smul.addr %s533, 8
        %s535 = scalar_lea.vmem [#allocation8], %s534
        // Predicated region
        $region61: #{tpu_custom_call.1} parent=47 // pred_check
          %p536 = pneg %p195
        $region62: #{tpu_custom_call.1} parent=47 // pred_check_branch
          %538 = sbr.rel (%p536) target = $region64
        $region63: #{tpu_custom_call.1} parent=47 // pred_region
          %s540 = ssub.s32 128, 128
          %541 = vsyncadd %s532, %s540
          %s542 = smul.addr %s25, 128
          %s543 = scalar_lea.hbm %s7, %s542
          %s545 = sshll.u32 %s535, 4
          %s546 = int_to_ptr.vmem [resolvable:$true] %s545
          %548 = dma.vmem_to_hbm [thread:$0]  %s546, 128, %s543, %s532
        $region64: #{tpu_custom_call.1} parent=47 // pred_fallthru
          _
      $region48: #{tpu_custom_call.1} parent=5 // pred_fallthru
        _
      %p549 = scmp.le.s32.totalorder 2, %s20
      // Predicated region
      $region65: #{tpu_custom_call.1} parent=5 // pred_check
        %p550 = pneg %p549
      $region66: #{tpu_custom_call.1} parent=5 // pred_check_branch
        %552 = sbr.rel (%p550) target = $region68
      $region67: #{tpu_custom_call.1} parent=5 // pred_region
        %s553 = ssub.s32 %s20, 2
        // Predicated region
        $region69: #{tpu_custom_call.1} parent=67 // pred_check
          %p554 = pneg %p201
        $region70: #{tpu_custom_call.1} parent=67 // pred_check_branch
          %556 = sbr.rel (%p554) target = $region72
        $region71: #{tpu_custom_call.1} parent=67 // pred_region
          %s557 = sand.u32 %s186, 1
          %s558 = scalar_lea.sflag [#allocation4], %s557
          %s559 = sand.u32 %s186, 1
          %s560 = smul.addr %s559, 8
          %s561 = scalar_lea.vmem [#allocation8], %s560
          %562 = dma.done %s558, 128
        $region72: #{tpu_custom_call.1} parent=67 // pred_fallthru
          _
      $region68: #{tpu_custom_call.1} parent=5 // pred_fallthru
        _
    $region6: #{tpu_custom_call.1} parent=1 // loop_footer
      %s24 = sadd.s32 1, %s20
    $region7: #{tpu_custom_call.1} parent=1 // loop_footer_branch
      %19 = sbr.rel target = $region3
    $region8: #{tpu_custom_call.1} parent=1 // loop_exit
      _
    %563 = vsyncpa [#allocation3], 1
    %s564 = scalar_lea.sflag [#allocation3], 1
    %565 = vsyncpa %s564, 1
    %566 = vsyncpa [#allocation6], 1
    %567 = vsyncpa [#allocation4], 1
    %s568 = scalar_lea.sflag [#allocation4], 1
    %569 = vsyncpa %s568, 1

</llo_original>
